<compile_context>
chip_gen: v7x
topology: tpu7x:2x2x1
jax: 0.10.0
libtpu: 0.0.40
codegen_flags: <defaults>
</compile_context>

<pallas_src>
import jax
import jax.numpy as jnp
from jax import lax
from jax.experimental import pallas as pl
from jax.experimental.pallas import tpu as pltpu

HIDDEN = 768  # transformer hidden size implied by `seq_length * 768`


# ---------------------------------------------------------------------------
# Kernel 1 (HBM-bound): K-tiled, split-parallel   h_partial[s] = x @ W1_s^T
# ---------------------------------------------------------------------------
def _make_matmul_kernel(num_k_per_split, x_resident):
    def kernel(x_ref, w1_ref, h_ref):
        s = pl.program_id(0)   # parallel split of the K reduction (both TCs on v7x)
        k = pl.program_id(1)   # K tiles within this split (reduction axis, last)

        @pl.when(k == 0)
        def _init():
            h_ref[...] = jnp.zeros_like(h_ref)

        if x_resident:
            # x lives whole in VMEM as (num_k_total, B, TK); pick this step's slab.
            x_tile = x_ref[s * num_k_per_split + k]
        else:
            x_tile = x_ref[...]

        # Partial x @ W1^T for this K tile.  W1 stays in PyTorch (out, in) layout so the
        # huge K axis is lane-dense and the streamed DMA is contiguous full-lane rows.
        h_ref[...] += lax.dot_general(
            x_tile, w1_ref[...],
            dimension_numbers=(((1,), (1,)), ((), ())),
            preferred_element_type=jnp.float32,
        )

    return kernel


# ---------------------------------------------------------------------------
# Kernel 2 (tiny): sum split partials, b1 + ReLU, final linear, soft-label CE
# ---------------------------------------------------------------------------
def _epilogue_kernel(hp_ref, b1_ref, w2_ref, b2_ref, t_ref, logits_ref, loss_ref):
    # l3 bias + ReLU (dropout l2/l4 are identity at inference); all f32.
    h = jnp.sum(hp_ref[...], axis=0) + b1_ref[...]          # (B, S)
    h = jnp.maximum(h, 0.0)

    # final linear: h @ W2^T + b2 (PyTorch (out, in) layout).
    logits = lax.dot_general(
        h, w2_ref[...],
        dimension_numbers=(((1,), (1,)), ((), ())),
        preferred_element_type=jnp.float32,
    ) + b2_ref[...]                                          # (B, C)
    logits_ref[...] = logits

    # nn.CrossEntropyLoss with float (probability) targets, reduction='mean':
    #   loss = mean_b( -sum_c targets[b,c] * log_softmax(logits)[b,c] )
    m = jnp.max(logits, axis=-1, keepdims=True)
    lse = jnp.log(jnp.sum(jnp.exp(logits - m), axis=-1, keepdims=True)) + m
    logp = logits - lse
    per_ex = -jnp.sum(t_ref[...] * logp, axis=-1, keepdims=True)   # (B, 1)
    loss_ref[...] = jnp.sum(per_ex, axis=0, keepdims=True) / float(per_ex.shape[0])


# ---------------------------------------------------------------------------
# Wrapper helpers
# ---------------------------------------------------------------------------
def _vmem_config():
    """Generation-aware (VMEM budget for tiles, vmem_limit_bytes)."""
    phys = None
    try:
        phys = int(pltpu.get_tpu_info().vmem_capacity_bytes)
    except Exception:
        phys = None
    if phys is not None and phys >= 128 * 1024 * 1024:        # v5e / v6e (128 MiB)
        return 96 * 1024 * 1024, 100 * 1024 * 1024
    # v7x (64 MiB physical per TC) or unknown -> conservative, safe everywhere.
    return 40 * 1024 * 1024, 48 * 1024 * 1024


def _pick_k_tile(k_split, rows, itemsize, avail_bytes):
    """Largest multiple of 128 dividing k_split whose double-buffered tiles fit."""
    cap = max(avail_bytes // (2 * rows * itemsize), 128)
    cap = min(cap, k_split)
    cap -= cap % 128
    cap = max(cap, 128)
    tk = cap
    while tk > 128 and k_split % tk != 0:
        tk -= 128
    if k_split % tk != 0 or tk % 128 != 0:
        raise ValueError(f"cannot tile K split {k_split} into multiples of 128")
    return tk


def ets_forward(last_hidden_state, w1, b1, w2, b2, targets, *,
                k_tile=None, x_resident=None):
    """last_hidden_state: (B, S, 768).
    w1: (S, S*768) PyTorch (out, in) layout, already in its at-rest matmul dtype
        (e.g. bf16 converted once at parameter-load time).
    b1: (1, S).  w2: (num_outputs, S) PyTorch layout.  b2: (1, num_outputs).
    targets: (B, num_outputs) soft labels.
    Returns (logits (B, num_outputs) f32, loss scalar f32)."""
    B, S, H = last_hidden_state.shape
    assert H == HIDDEN
    K = S * H
    C = w2.shape[0]
    assert w1.shape == (S, K) and b1.shape == (1, S)
    assert w2.shape == (C, S) and b2.shape == (1, C) and targets.shape == (B, C)

    # Glue reshape == torch .reshape(-1, seq_length*768).  Only the tiny activation is
    # cast to the weight's at-rest dtype; W1 itself is passed through untouched.
    x = last_hidden_state.reshape(B, K).astype(w1.dtype)
    itemsize = jnp.dtype(w1.dtype).itemsize

    budget, vmem_limit = _vmem_config()

    # Split the K reduction across a leading "parallel" grid axis -> both v7x TCs each
    # stream half of W1 (no-cost serial loop on single-TC v5e/v6e).
    num_splits = 2 if (K // 2) % 128 == 0 else 1
    k_split = K // num_splits

    x_bytes = B * K * itemsize
    if x_resident is None:
        x_resident = x_bytes <= budget // 4           # keep x whole in VMEM when small
    rows = S if x_resident else S + B
    avail = budget - (x_bytes if x_resident else 0) - 2 * B * S * 4 - (1 << 20)
    if k_tile is None:
        k_tile = _pick_k_tile(k_split, rows, itemsize, avail)
    if k_split % k_tile != 0 or k_tile % 128 != 0:
        raise ValueError(f"k_tile={k_tile} must be a multiple of 128 dividing {k_split}")
    num_k = k_split // k_tile
    num_k_total = num_splits * num_k

    if x_resident:
        # (num_k_total, B, TK): resident in VMEM, indexed by grid step in the kernel.
        x_in = jnp.transpose(x.reshape(B, num_k_total, k_tile), (1, 0, 2))
        x_spec = pl.BlockSpec((num_k_total, B, k_tile), lambda s, k: (0, 0, 0))
    else:
        x_in = x
        x_spec = pl.BlockSpec((B, k_tile), lambda s, k: (0, s * num_k + k))

    h_parts = pl.pallas_call(
        _make_matmul_kernel(num_k, x_resident),
        out_shape=jax.ShapeDtypeStruct((num_splits, B, S), jnp.float32),
        grid=(num_splits, num_k),
        in_specs=[
            x_spec,                                                     # activations
            pl.BlockSpec((S, k_tile), lambda s, k: (0, s * num_k + k)),  # W1 stream
        ],
        out_specs=pl.BlockSpec((None, B, S), lambda s, k: (s, 0, 0)),   # per-split acc
        compiler_params=pltpu.CompilerParams(
            dimension_semantics=("parallel", "arbitrary"),
            vmem_limit_bytes=vmem_limit,
        ),
    )(x_in, w1)

    # Tiny epilogue: everything (B*S, C*S, B*C elements) fits a single resident step.
    logits, loss = pl.pallas_call(
        _epilogue_kernel,
        out_shape=(jax.ShapeDtypeStruct((B, C), jnp.float32),
                   jax.ShapeDtypeStruct((1, 1), jnp.float32)),
    )(h_parts,
      b1.astype(jnp.float32), w2.astype(jnp.float32), b2.astype(jnp.float32),
      targets.astype(jnp.float32))

    return logits, loss[0, 0]


if __name__ == "__main__":
    key = jax.random.PRNGKey(0)
    B, S, NUM_OUTPUTS = 2, 8, 3                       # batch=2, seq_length=8

    k_h, k_w1, k_b1, k_w2, k_b2, k_t = jax.random.split(key, 6)

    # Stand-in for l1(...)['last_hidden_state'] (backbone not translated).
    last_hidden_state = jax.random.normal(k_h, (B, S, HIDDEN), jnp.float32)

    # torch.nn.Linear init U(-1/sqrt(fan_in), 1/sqrt(fan_in)); PyTorch (out, in) layout
    # keeps the large K axis lane-dense.
    fan1 = S * HIDDEN
    bound1 = 1.0 / float(fan1) ** 0.5
    w1 = jax.random.uniform(k_w1, (S, fan1), jnp.float32, -bound1, bound1)
    b1 = jax.random.uniform(k_b1, (1, S), jnp.float32, -bound1, bound1)

    bound2 = 1.0 / float(S) ** 0.5
    w2 = jax.random.uniform(k_w2, (NUM_OUTPUTS, S), jnp.float32, -bound2, bound2)
    b2 = jax.random.uniform(k_b2, (1, NUM_OUTPUTS), jnp.float32, -bound2, bound2)

    # Float (soft) targets, as in CrossEntropyLoss()(output.float(), targets.float()).
    targets = jax.nn.softmax(
        jax.random.normal(k_t, (B, NUM_OUTPUTS), jnp.float32), axis=-1)

    # Pure-JAX f32 reference of the fused head.
    x_flat = last_hidden_state.reshape(B, S * HIDDEN)
    h_ref = jnp.maximum(x_flat @ w1.T + b1, 0.0)
    logits_ref = h_ref @ w2.T + b2
    logp_ref = jax.nn.log_softmax(logits_ref, axis=-1)
    loss_ref = jnp.mean(-jnp.sum(targets * logp_ref, axis=-1))

    # 1) f32 weights, auto tile (W1 fits whole -> one K step per parallel split).
    logits, loss = ets_forward(last_hidden_state, w1, b1, w2, b2, targets)
    jax.block_until_ready((logits, loss))
    assert jnp.allclose(logits, logits_ref, atol=1e-4, rtol=1e-4)
    assert jnp.allclose(loss, loss_ref, atol=1e-4, rtol=1e-4)

    # 2) f32, forced small k_tile -> exercises the multi-step K accumulation pipeline
    #    with x held resident in VMEM (grid (2, 6)).
    logits2, loss2 = ets_forward(last_hidden_state, w1, b1, w2, b2, targets, k_tile=512)
    jax.block_until_ready((logits2, loss2))
    assert jnp.allclose(logits2, logits_ref, atol=1e-4, rtol=1e-4)
    assert jnp.allclose(loss2, loss_ref, atol=1e-4, rtol=1e-4)

    # 3) f32, streamed-x fallback path (x not resident).
    logits3, loss3 = ets_forward(last_hidden_state, w1, b1, w2, b2, targets,
                                 k_tile=512, x_resident=False)
    jax.block_until_ready((logits3, loss3))
    assert jnp.allclose(logits3, logits_ref, atol=1e-4, rtol=1e-4)
    assert jnp.allclose(loss3, loss_ref, atol=1e-4, rtol=1e-4)

    # 4) bf16-at-rest W1: converted ONCE here (parameter-load time), not per call.
    #    Halves the dominant HBM stream; f32 accumulation + f32 epilogue remain.
    w1_bf16 = w1.astype(jnp.bfloat16)
    logits_bf, loss_bf = ets_forward(last_hidden_state, w1_bf16, b1, w2, b2, targets)
    jax.block_until_ready((logits_bf, loss_bf))
    assert jnp.allclose(logits_bf, logits_ref, atol=2e-2, rtol=2e-2)
    assert jnp.allclose(loss_bf, loss_ref, atol=2e-2, rtol=2e-2)

    print("KERNEL_OK")
</pallas_src>

<mosaic_0001>
module attributes {stable_mosaic.version = 11 : i64} {
  func.func @kernel(%arg0: i32, %arg1: i32, %arg2: memref<2x2x3072xf32, #tpu.memory_space<vmem>>, %arg3: memref<8x3072xf32, #tpu.memory_space<vmem>>, %arg4: memref<1x2x8xf32, #tpu.memory_space<vmem>>) attributes {dimension_semantics = [#tpu.dimension_semantics<parallel>, #tpu.dimension_semantics<arbitrary>], iteration_bounds = array<i64: 2, 1>, scalar_prefetch = 0 : i64, scratch_operands = 0 : i64, tpu.core_type = #tpu.core_type<tc>, window_params = [{pipeline_mode = #tpu.pipeline_mode<synchronous>, transform_indices = @transform_0, window_bounds = array<i64: 2, 2, 3072>}, {transform_indices = @transform_1, window_bounds = array<i64: 8, 3072>}, {transform_indices = @transform_2, window_bounds = array<i64: 1, 2, 8>}]} {
    %c0_i32 = arith.constant 0 : i32
    %0 = arith.cmpi eq, %arg1, %c0_i32 : i32
    %1 = arith.extui %0 : i1 to i32
    %c0_i32_0 = arith.constant 0 : i32
    %2 = arith.cmpi ne, %1, %c0_i32_0 : i32
    scf.if %2 {
      %cst_10 = arith.constant 0.000000e+00 : f32
      %16 = vector.broadcast %cst_10 : f32 to vector<2x8xf32>
      %c0_11 = arith.constant 0 : index
      %c0_12 = arith.constant 0 : index
      %c0_13 = arith.constant 0 : index
      %17 = vector.load %arg4[%c0_11, %c0_12, %c0_13] : memref<1x2x8xf32, #tpu.memory_space<vmem>>, vector<1x2x8xf32>
      %18 = vector.shape_cast %17 : vector<1x2x8xf32> to vector<2x8xf32>
      %19 = vector.shape_cast %16 : vector<2x8xf32> to vector<1x2x8xf32>
      tpu.vector_store %arg4[%c0_11, %c0_12, %c0_13], %19 {strides = array<i32>} : memref<1x2x8xf32, #tpu.memory_space<vmem>>, vector<1x2x8xf32>,
    } else {
    }
    %c1_i32 = arith.constant 1 : i32
    %3 = arith.muli %arg0, %c1_i32 : i32
    %4 = arith.addi %3, %arg1 : i32
    %5 = arith.index_cast %4 : i32 to index
    %c0 = arith.constant 0 : index
    %c0_1 = arith.constant 0 : index
    %6 = vector.load %arg2[%5, %c0, %c0_1] : memref<2x2x3072xf32, #tpu.memory_space<vmem>>, vector<1x2x3072xf32>
    %7 = vector.shape_cast %6 : vector<1x2x3072xf32> to vector<2x3072xf32>
    %c0_2 = arith.constant 0 : index
    %c0_3 = arith.constant 0 : index
    %c0_4 = arith.constant 0 : index
    %8 = vector.load %arg4[%c0_2, %c0_3, %c0_4] : memref<1x2x8xf32, #tpu.memory_space<vmem>>, vector<1x2x8xf32>
    %9 = vector.shape_cast %8 : vector<1x2x8xf32> to vector<2x8xf32>
    %c0_5 = arith.constant 0 : index
    %c0_6 = arith.constant 0 : index
    %10 = vector.load %arg3[%c0_5, %c0_6] : memref<8x3072xf32, #tpu.memory_space<vmem>>, vector<8x3072xf32>
    %cst = arith.constant dense<0.000000e+00> : vector<2x8xf32>
    %11 = tpu.matmul %7, %10, %cst {dimension_numbers = #tpu.dot_dimension_numbers<[1], [1], [0], [0], [0, 0, 1, 0], [], []>} : vector<2x3072xf32>, vector<8x3072xf32>, vector<2x8xf32> -> vector<2x8xf32>
    %12 = arith.addf %9, %11 : vector<2x8xf32>
    %c0_7 = arith.constant 0 : index
    %c0_8 = arith.constant 0 : index
    %c0_9 = arith.constant 0 : index
    %13 = vector.load %arg4[%c0_7, %c0_8, %c0_9] : memref<1x2x8xf32, #tpu.memory_space<vmem>>, vector<1x2x8xf32>
    %14 = vector.shape_cast %13 : vector<1x2x8xf32> to vector<2x8xf32>
    %15 = vector.shape_cast %12 : vector<2x8xf32> to vector<1x2x8xf32>
    tpu.vector_store %arg4[%c0_7, %c0_8, %c0_9], %15 {strides = array<i32>} : memref<1x2x8xf32, #tpu.memory_space<vmem>>, vector<1x2x8xf32>,
    return
  }
  func.func @transform_0(%arg0: i32, %arg1: i32) -> (i32, i32, i32) {
    %c0_i32 = arith.constant 0 : i32
    %c0_i32_0 = arith.constant 0 : i32
    %c0_i32_1 = arith.constant 0 : i32
    %c0_i32_2 = arith.constant 0 : i32
    return %c0_i32, %c0_i32_0, %c0_i32_1 : i32, i32, i32
  }
  func.func @transform_1(%arg0: i32, %arg1: i32) -> (i32, i32) {
    %c1_i32 = arith.constant 1 : i32
    %0 = arith.muli %arg0, %c1_i32 : i32
    %1 = arith.addi %0, %arg1 : i32
    %c0_i32 = arith.constant 0 : i32
    %c0_i32_0 = arith.constant 0 : i32
    return %c0_i32, %1 : i32, i32
  }
  func.func @transform_2(%arg0: i32, %arg1: i32) -> (i32, i32, i32) {
    %c0_i32 = arith.constant 0 : i32
    %c0_i32_0 = arith.constant 0 : i32
    %c0_i32_1 = arith.constant 0 : i32
    return %arg0, %c0_i32, %c0_i32_0 : i32, i32, i32
  }
}

</mosaic_0001>

<llo_original>
// kernel: tpu_custom_call.1
$region0: #{tpu_custom_call.1}
  #allocation0 [shape = 'u32[]', space=smem, size = 0x4, offset = 0x4, fixed_abs, tag = 'smem constant byte address 0x4 - core index']
  #allocation1 [shape = 'u32[144,128]{1,0:T(1,128)}', space=vmem, size = 0x12000, scoped, tag = 'internal scratch']
  %s0 = inlined_call_operand.hbm [shape: f32[2,2,3072], index: 0, kind: input, shape index: {}]
  %s1 = inlined_call_operand.hbm [shape: f32[8,6144], index: 1, kind: input, shape index: {}]
  %s2 = inlined_call_operand.hbm [shape: f32[2,2,8], index: 2, kind: output, shape index: {}]
  %s3 = sld [smem:[#allocation0]]
  $region53: #{tpu_custom_call.1} parent=0
    _
  %s5 = ssub.s32 1, %s3
  %s6 = scalar_select 0, %s5, %s3
  $region1: #{tpu_custom_call.1} parent=0
    #allocation2 [shape = 'u8[49152]{0}', space=vmem, size = 0xc000, scoped, tag = 'input window, operand 0, single buffered']
    #allocation3 [shape = 's32[2]{0}', space=sflag, size = 0x8, scoped, tag = 'scoped memory for tpu_custom_call.1']
    #allocation4 [shape = 's32[2]{0}', space=sflag, size = 0x8, scoped, tag = 'scoped memory for tpu_custom_call.1']
    #allocation5 [shape = 'u8[196608]{0}', space=vmem, size = 0x30000, scoped, tag = 'input window, operand 1']
    #allocation6 [shape = 's32[2]{0}', space=sflag, size = 0x8, scoped, tag = 'scoped memory for tpu_custom_call.1']
    #allocation7 [shape = 'u8[2048]{0}', space=vmem, size = 0x800, scoped, tag = 'output window, operand 0']
    %7 = vsyncpa [#allocation3], 0
    %8 = vsyncpa [#allocation6], 0
    %s9 = scalar_lea.sflag [#allocation6], 1
    %10 = vsyncpa %s9, 0
    %11 = vsyncpa [#allocation4], 0
    %s12 = scalar_lea.sflag [#allocation4], 1
    %13 = vsyncpa %s12, 0
    loop: start=0, step=1, limit=4
    $region2: #{tpu_custom_call.1} parent=1 // loop_pre_header
      _
    $region3: #{tpu_custom_call.1} parent=1 // loop_header
      %s15 = sphi 0, %s19
      %p16 = scmp.ge.s32.totalorder %s15, 4
      %s22 = sphi 0, %s34
      %s23 = sphi 0, %s30
      %s24 = sphi 0, %s22
      %s25 = sphi 0, %s23
      %s26 = sphi 0, %s24
      %s27 = sphi 0, %s25
      %s35 = sphi 0, %s35
      %s37 = sphi 0, %s35
      %s38 = sphi 0, %s37
      %s52 = sphi 0, %s38
      %s60 = sphi 0, %s62
      %s63 = sphi 0, %s60
      %s64 = sphi 0, %s63
      %s80 = sphi 0, %s64
      %s86 = sphi 0, %s88
      %s89 = sphi 0, %s86
      %s90 = sphi 0, %s89
      %s106 = sphi 0, %s90
    $region4: #{tpu_custom_call.1} parent=1 // loop_header_branch
      %18 = sbr.rel (%p16) target = $region8
    $region5: #{tpu_custom_call.1} parent=1 // loop_body
      %s20 = ssub.s32 %s15, 1
      %s21 = ssub.s32 %s15, 2
      %s28 = sadd.s32 1, %s23
      %p29 = scmp.ge.s32.totalorder %s28, 1
      %s30 = scalar_select %p29, 0, %s28
      %s31 = sadd.s32 1, %s22
      %s32 = scalar_select %p29, %s31, %s22
      %p33 = scmp.ge.s32.totalorder %s32, 2
      %s34 = scalar_select %p33, 0, %s32
      %s36 = sadd.s32 %s35, 1
      %p39 = scmp.eq.s32.totalorder %s15, 1
      %p40 = scmp.ne.s32.totalorder %s35, %s37
      %p41 = scmp.eq.s32.totalorder %s15, 0
      %p42 = por %p40, %p41
      %p43 = scmp.ne.s32.totalorder %s35, %s37
      %p44 = scmp.eq.s32.totalorder %s20, 1
      %p45 = por %p43, %p44
      %p46 = scmp.ne.s32.totalorder %s37, %s38
      %p47 = scmp.eq.s32.totalorder %s20, 0
      %p48 = por %p46, %p47
      %p49 = scmp.ne.s32.totalorder %s37, %s38
      %p50 = scmp.eq.s32.totalorder %s21, 1
      %p51 = por %p49, %p50
      %p53 = scmp.ne.s32.totalorder %s38, %s52
      %p54 = scmp.eq.s32.totalorder %s21, 0
      %p55 = por %p53, %p54
      %s56 = sadd.s32 %s22, %s23
      %s57 = sadd.s32 %s34, %s30
      %s58 = ssub.s32 %s56, %s57
      %p59 = scmp.eq.s32.totalorder %s58, 0
      %s61 = sadd.s32 %s60, 1
      %s62 = scalar_select %p59, %s60, %s61
      %p65 = pneg %p59
      %p66 = scmp.eq.s32.totalorder %s15, 1
      %p67 = por %p65, %p66
      %p68 = scmp.ne.s32.totalorder %s60, %s63
      %p69 = scmp.eq.s32.totalorder %s15, 0
      %p70 = por %p68, %p69
      %p71 = scmp.ne.s32.totalorder %s60, %s63
      %p72 = scmp.eq.s32.totalorder %s20, 1
      %p73 = por %p71, %p72
      %p74 = scmp.ne.s32.totalorder %s63, %s64
      %p75 = scmp.eq.s32.totalorder %s20, 0
      %p76 = por %p74, %p75
      %p77 = scmp.ne.s32.totalorder %s63, %s64
      %p78 = scmp.eq.s32.totalorder %s21, 1
      %p79 = por %p77, %p78
      %p81 = scmp.ne.s32.totalorder %s64, %s80
      %p82 = scmp.eq.s32.totalorder %s21, 0
      %p83 = por %p81, %p82
      %s84 = ssub.s32 %s22, %s34
      %p85 = scmp.eq.s32.totalorder %s84, 0
      %s87 = sadd.s32 %s86, 1
      %s88 = scalar_select %p85, %s86, %s87
      %p91 = pneg %p85
      %p92 = scmp.eq.s32.totalorder %s15, 1
      %p93 = por %p91, %p92
      %p94 = scmp.ne.s32.totalorder %s86, %s89
      %p95 = scmp.eq.s32.totalorder %s15, 0
      %p96 = por %p94, %p95
      %p97 = scmp.ne.s32.totalorder %s86, %s89
      %p98 = scmp.eq.s32.totalorder %s20, 1
      %p99 = por %p97, %p98
      %p100 = scmp.ne.s32.totalorder %s89, %s90
      %p101 = scmp.eq.s32.totalorder %s20, 0
      %p102 = por %p100, %p101
      %p103 = scmp.ne.s32.totalorder %s89, %s90
      %p104 = scmp.eq.s32.totalorder %s21, 1
      %p105 = por %p103, %p104
      %p107 = scmp.ne.s32.totalorder %s90, %s106
      %p108 = scmp.eq.s32.totalorder %s21, 0
      %p109 = por %p107, %p108
      %p110 = scmp.le.s32.totalorder 1, %s15
      %p111 = scmp.lt.s32.totalorder %s15, 3
      %p112 = pnand %p110, %p111
      %p113 = pneg %p112
      // Predicated region
      $region9: #{tpu_custom_call.1} parent=5 // pred_check
        _
      $region10: #{tpu_custom_call.1} parent=5 // pred_check_branch
        %115 = sbr.rel (%p112) target = $region12
      $region11: #{tpu_custom_call.1} parent=5 // pred_region
        %s116 = ssub.s32 %s15, 1
        // Predicated region
        $region13: #{tpu_custom_call.1} parent=11 // pred_check
          %p117 = pneg %p48
        $region14: #{tpu_custom_call.1} parent=11 // pred_check_branch
          %119 = sbr.rel (%p117) target = $region16
        $region15: #{tpu_custom_call.1} parent=11 // pred_region
          %s121 = ssub.s32 1536, 1536
          %122 = vsyncadd [#allocation3], %s121
          %s123 = sshll.u32 [#allocation2], 4
          %s124 = int_to_ptr.vmem [resolvable:$true] %s123
          %129 = dma.hbm_to_vmem [thread:$0]  %s0, 1536, %s124, [#allocation3], 768, 768, 48
        $region16: #{tpu_custom_call.1} parent=11 // pred_fallthru
          _
      $region12: #{tpu_custom_call.1} parent=5 // pred_fallthru
        _
      %p130 = scmp.lt.s32.totalorder %s15, 2
      // Predicated region
      $region17: #{tpu_custom_call.1} parent=5 // pred_check
        %p131 = pneg %p130
      $region18: #{tpu_custom_call.1} parent=5 // pred_check_branch
        %133 = sbr.rel (%p131) target = $region20
      $region19: #{tpu_custom_call.1} parent=5 // pred_region
        // Predicated region
        $region21: #{tpu_custom_call.1} parent=19 // pred_check
          %p134 = pneg %p70
        $region22: #{tpu_custom_call.1} parent=19 // pred_check_branch
          %136 = sbr.rel (%p134) target = $region24
        $region23: #{tpu_custom_call.1} parent=19 // pred_region
          %s137 = sand.u32 %s60, 1
          %s138 = scalar_lea.sflag [#allocation6], %s137
          %s139 = sand.u32 %s60, 1
          %s140 = smul.addr %s139, 192
          %s141 = scalar_lea.vmem [#allocation5], %s140
          %s142 = sadd.s32 %s22, %s23
          %s143 = smul.u32 24, %s142
          %s145 = ssub.s32 3072, 3072
          %146 = vsyncadd %s138, %s145
          %s147 = smul.addr %s143, 128
          %s148 = scalar_lea.hbm %s1, %s147
          %s150 = sshll.u32 %s141, 4
          %s151 = int_to_ptr.vmem [resolvable:$true] %s150
          %153 = dma.hbm_to_vmem [thread:$0]  %s148, 3072, %s151, %s138
        $region24: #{tpu_custom_call.1} parent=19 // pred_fallthru
          _
      $region20: #{tpu_custom_call.1} parent=5 // pred_fallthru
        _
      %p154 = scmp.le.s32.totalorder 1, %s15
      %p155 = scmp.lt.s32.totalorder %s15, 3
      %p156 = pnand %p154, %p155
      %p157 = pneg %p156
      // Predicated region
      $region25: #{tpu_custom_call.1} parent=5 // pred_check
        _
      $region26: #{tpu_custom_call.1} parent=5 // pred_check_branch
        %159 = sbr.rel (%p156) target = $region28
      $region27: #{tpu_custom_call.1} parent=5 // pred_region
        %s160 = ssub.s32 %s15, 1
        // Predicated region
        $region29: #{tpu_custom_call.1} parent=27 // pred_check
          %p161 = pneg %p48
        $region30: #{tpu_custom_call.1} parent=27 // pred_check_branch
          %163 = sbr.rel (%p161) target = $region32
        $region31: #{tpu_custom_call.1} parent=27 // pred_region
          %164 = dma.done [#allocation3], 1536
        $region32: #{tpu_custom_call.1} parent=27 // pred_fallthru
          _
        %s165 = sand.u32 %s63, 1
        %s166 = scalar_lea.sflag [#allocation6], %s165
        %s167 = sand.u32 %s63, 1
        %s168 = smul.addr %s167, 192
        %s169 = scalar_lea.vmem [#allocation5], %s168
        // Predicated region
        $region33: #{tpu_custom_call.1} parent=27 // pred_check
          %p170 = pneg %p76
        $region34: #{tpu_custom_call.1} parent=27 // pred_check_branch
          %172 = sbr.rel (%p170) target = $region36
        $region35: #{tpu_custom_call.1} parent=27 // pred_region
          %173 = dma.done %s166, 3072
        $region36: #{tpu_custom_call.1} parent=27 // pred_fallthru
          _
        %p174 = pneg %p48
        %p175 = pneg %p45
        %s176 = sand.u32 %s63, 1
        %s177 = scalar_lea.sflag [#allocation6], %s176
        %s178 = sand.u32 %s63, 1
        %s179 = smul.addr %s178, 192
        %s180 = scalar_lea.vmem [#allocation5], %s179
        %p181 = pneg %p76
        %p182 = pneg %p73
        %p183 = pneg %p102
        %p184 = pneg %p99
        %s185 = sand.u32 %s89, 1
        %s186 = scalar_lea.sflag [#allocation4], %s185
        %s187 = sand.u32 %s89, 1
        %s188 = smul.addr %s187, 2
        %s189 = scalar_lea.vmem [#allocation7], %s188
        %s190 = sadd.s32 %s24, %s25
        %s191 = smul.u32 24, %s190
        %p192 = scmp.eq.s32.totalorder %s25, 0
        // Predicated region
        $region37: #{tpu_custom_call.1} parent=27 // pred_check
          %p193 = pneg %p192
        $region38: #{tpu_custom_call.1} parent=27 // pred_check_branch
          %195 = sbr.rel (%p193) target = $region40
        $region39: #{tpu_custom_call.1} parent=27 // pred_region
          %vm196 = vcmask 58368
          %197 = vst.msk [vmem:[%s189] sm:$0x3] %vm196, 0.0
        $region40: #{tpu_custom_call.1} parent=27 // pred_fallthru
          _
        %s198 = sadd.s32 %s24, %s25
        %s199 = smul.u32 %s198, 24
        %s200 = smul.addr %s199, 2
        %s201 = scalar_lea.vmem [#allocation2], %s200
        %v202 = vld [vmem:[%s201] sm:$0xff]
        %v203 = vld [vmem:[%s201 + $0x8] sm:$0xff]
        %v204 = vld [vmem:[%s201 + $0x10] sm:$0xff]
        %v205 = vld [vmem:[%s201 + $0x18] sm:$0xff]
        %v206 = vld [vmem:[%s201 + $0x20] sm:$0xff]
        %v207 = vld [vmem:[%s201 + $0x28] sm:$0xff]
        %v208 = vld [vmem:[%s189] sm:$0x3]
        %v209 = vld [vmem:[%s169] sm:$0xff]
        %v210 = vld [vmem:[%s169 + $0x8] sm:$0xff]
        %v211 = vld [vmem:[%s169 + $0x10] sm:$0xff]
        %v212 = vld [vmem:[%s169 + $0x18] sm:$0xff]
        %v213 = vld [vmem:[%s169 + $0x20] sm:$0xff]
        %v214 = vld [vmem:[%s169 + $0x28] sm:$0xff]
        %v215 = vld [vmem:[%s169 + $0x30] sm:$0xff]
        %v216 = vld [vmem:[%s169 + $0x38] sm:$0xff]
        %v217 = vld [vmem:[%s169 + $0x40] sm:$0xff]
        %v218 = vld [vmem:[%s169 + $0x48] sm:$0xff]
        %v219 = vld [vmem:[%s169 + $0x50] sm:$0xff]
        %v220 = vld [vmem:[%s169 + $0x58] sm:$0xff]
        %v221 = vld [vmem:[%s169 + $0x60] sm:$0xff]
        %v222 = vld [vmem:[%s169 + $0x68] sm:$0xff]
        %v223 = vld [vmem:[%s169 + $0x70] sm:$0xff]
        %v224 = vld [vmem:[%s169 + $0x78] sm:$0xff]
        %v225 = vld [vmem:[%s169 + $0x80] sm:$0xff]
        %v226 = vld [vmem:[%s169 + $0x88] sm:$0xff]
        %v227 = vld [vmem:[%s169 + $0x90] sm:$0xff]
        %v228 = vld [vmem:[%s169 + $0x98] sm:$0xff]
        %v229 = vld [vmem:[%s169 + $0xa0] sm:$0xff]
        %v230 = vld [vmem:[%s169 + $0xa8] sm:$0xff]
        %v231 = vld [vmem:[%s169 + $0xb0] sm:$0xff]
        %v232 = vld [vmem:[%s169 + $0xb8] sm:$0xff]
        %v239 = vcombine.high %v202, %v202
        %v241 = vunpack.c.l.s4 1983009808
        %v242 = vunpack.c.0.s8 %v241
        %v243 = vlaneseq
        %v244 = vshrl.u32 %v243, 7
        %v245 = vsub.s32 %v242, %v244
        %v246 = vrot.slane %v202, %v245
        %v248 = vunpack.c.l.s4 1983009808
        %v249 = vunpack.c.0.s8 %v248
        %v250 = vlaneseq
        %v251 = vshrl.u32 %v250, 7
        %v252 = vsub.s32 %v249, %v251
        %v253 = vrot.slane %v239, %v252
        %v254 = vcombine.high %v246, %v246
        %v255 = vcombine.high %v253, %v253
        %v256 = vcombine.high %v203, %v203
        %v258 = vunpack.c.l.s4 1983009808
        %v259 = vunpack.c.0.s8 %v258
        %v260 = vlaneseq
        %v261 = vshrl.u32 %v260, 7
        %v262 = vsub.s32 %v259, %v261
        %v263 = vrot.slane %v203, %v262
        %v265 = vunpack.c.l.s4 1983009808
        %v266 = vunpack.c.0.s8 %v265
        %v267 = vlaneseq
        %v268 = vshrl.u32 %v267, 7
        %v269 = vsub.s32 %v266, %v268
        %v270 = vrot.slane %v256, %v269
        %v271 = vcombine.high %v263, %v263
        %v272 = vcombine.high %v270, %v270
        %v273 = vcombine.high %v204, %v204
        %v275 = vunpack.c.l.s4 1983009808
        %v276 = vunpack.c.0.s8 %v275
        %v277 = vlaneseq
        %v278 = vshrl.u32 %v277, 7
        %v279 = vsub.s32 %v276, %v278
        %v280 = vrot.slane %v204, %v279
        %v282 = vunpack.c.l.s4 1983009808
        %v283 = vunpack.c.0.s8 %v282
        %v284 = vlaneseq
        %v285 = vshrl.u32 %v284, 7
        %v286 = vsub.s32 %v283, %v285
        %v287 = vrot.slane %v273, %v286
        %v288 = vcombine.high %v280, %v280
        %v289 = vcombine.high %v287, %v287
        %v290 = vcombine.high %v205, %v205
        %v292 = vunpack.c.l.s4 1983009808
        %v293 = vunpack.c.0.s8 %v292
        %v294 = vlaneseq
        %v295 = vshrl.u32 %v294, 7
        %v296 = vsub.s32 %v293, %v295
        %v297 = vrot.slane %v205, %v296
        %v299 = vunpack.c.l.s4 1983009808
        %v300 = vunpack.c.0.s8 %v299
        %v301 = vlaneseq
        %v302 = vshrl.u32 %v301, 7
        %v303 = vsub.s32 %v300, %v302
        %v304 = vrot.slane %v290, %v303
        %v305 = vcombine.high %v297, %v297
        %v306 = vcombine.high %v304, %v304
        %v307 = vcombine.high %v206, %v206
        %v309 = vunpack.c.l.s4 1983009808
        %v310 = vunpack.c.0.s8 %v309
        %v311 = vlaneseq
        %v312 = vshrl.u32 %v311, 7
        %v313 = vsub.s32 %v310, %v312
        %v314 = vrot.slane %v206, %v313
        %v316 = vunpack.c.l.s4 1983009808
        %v317 = vunpack.c.0.s8 %v316
        %v318 = vlaneseq
        %v319 = vshrl.u32 %v318, 7
        %v320 = vsub.s32 %v317, %v319
        %v321 = vrot.slane %v307, %v320
        %v322 = vcombine.high %v314, %v314
        %v323 = vcombine.high %v321, %v321
        %v324 = vcombine.high %v207, %v207
        %v326 = vunpack.c.l.s4 1983009808
        %v327 = vunpack.c.0.s8 %v326
        %v328 = vlaneseq
        %v329 = vshrl.u32 %v328, 7
        %v330 = vsub.s32 %v327, %v329
        %v331 = vrot.slane %v207, %v330
        %v333 = vunpack.c.l.s4 1983009808
        %v334 = vunpack.c.0.s8 %v333
        %v335 = vlaneseq
        %v336 = vshrl.u32 %v335, 7
        %v337 = vsub.s32 %v334, %v336
        %v338 = vrot.slane %v324, %v337
        %v339 = vcombine.high %v331, %v331
        %v340 = vcombine.high %v338, %v338
        %365 = vmatprep.subr.mxu0 %v210
        %366 = vmatpush1.xpose.msra.mxu0 %v209
        %367 = vmatprep.subr.mxu0 0.0
        %368 = vmatpush1.xpose.msra.mxu0 0.0
        %369 = vmatprep.subr.mxu0 0.0
        %370 = vmatpush1.xpose.msra.mxu0 0.0
        %371 = vmatprep.subr.mxu0 0.0
        %372 = vmatpush1.xpose.msra.mxu0 0.0
        %373 = vmatprep.subr.mxu0 0.0
        %374 = vmatpush1.xpose.msra.mxu0 0.0
        %375 = vmatprep.subr.mxu0 0.0
        %376 = vmatpush1.xpose.msra.mxu0 0.0
        %377 = vmatprep.subr.mxu0 0.0
        %378 = vmatpush1.xpose.msra.mxu0 0.0
        %379 = vmatprep.subr.mxu0 0.0
        %380 = vmatpush1.xpose.msra.mxu0 0.0
        %381 = vmatprep.subr.mxu0 0.0
        %382 = vmatpush1.xpose.msra.mxu0 0.0
        %383 = vmatprep.subr.mxu0 0.0
        %384 = vmatpush1.xpose.msra.mxu0 0.0
        %385 = vmatprep.subr.mxu0 0.0
        %386 = vmatpush1.xpose.msra.mxu0 0.0
        %387 = vmatprep.subr.mxu0 0.0
        %388 = vmatpush1.xpose.msra.mxu0 0.0
        %389 = vmatprep.subr.mxu0 0.0
        %390 = vmatpush1.xpose.msra.mxu0 0.0
        %391 = vmatprep.subr.mxu0 0.0
        %392 = vmatpush1.xpose.msra.mxu0 0.0
        %393 = vmatprep.subr.mxu0 0.0
        %394 = vmatpush1.xpose.msra.mxu0 0.0
        %395 = vmatprep.subr.mxu0 0.0
        %396 = vmatpush1.xpose.msra.mxu0 0.0
        %397 = vmatprep.subr.mxu0 0.0
        %398 = vmatpush1.xpose.msra.mxu0 0.0
        %399 = vmatprep.subr.mxu0 0.0
        %400 = vmatpush1.xpose.msra.mxu0 0.0
        %401 = vmatprep.subr.mxu0 0.0
        %402 = vmatpush1.xpose.msra.mxu0 0.0
        %403 = vmatprep.subr.mxu0 0.0
        %404 = vmatpush1.xpose.msra.mxu0 0.0
        %405 = vmatprep.subr.mxu0 0.0
        %406 = vmatpush1.xpose.msra.mxu0 0.0
        %407 = vmatprep.subr.mxu0 0.0
        %408 = vmatpush1.xpose.msra.mxu0 0.0
        %409 = vmatprep.subr.mxu0 0.0
        %410 = vmatpush1.xpose.msra.mxu0 0.0
        %411 = vmatprep.subr.mxu0 0.0
        %412 = vmatpush1.xpose.msra.mxu0 0.0
        %413 = vmatprep.subr.mxu0 0.0
        %414 = vmatpush1.xpose.msra.mxu0 0.0
        %415 = vmatprep.subr.mxu0 0.0
        %416 = vmatpush1.xpose.msra.mxu0 0.0
        %417 = vmatprep.subr.mxu0 0.0
        %418 = vmatpush1.xpose.msra.mxu0 0.0
        %419 = vmatprep.subr.mxu0 0.0
        %420 = vmatpush1.xpose.msra.mxu0 0.0
        %421 = vmatprep.subr.mxu0 0.0
        %422 = vmatpush1.xpose.msra.mxu0 0.0
        %423 = vmatprep.subr.mxu0 0.0
        %424 = vmatpush1.xpose.msra.mxu0 0.0
        %425 = vmatprep.subr.mxu0 0.0
        %426 = vmatpush1.xpose.msra.mxu0 0.0
        %427 = vmatprep.subr.mxu0 0.0
        %428 = vmatpush1.xpose.msra.mxu0 0.0
        %429 = vmatprep.mubr.f32.mxu0 %v254
        %430 = vmatmul.mubr.f32.gmra.mrb[0].mxu0 %v246
        %v431 = vpop.f32.mrb[0].mxu0
        %v432 = vadd.f32 0.0, %v431
        %v433 = vpop.f32.mrb[0].mxu0
        %434 = vdwg.mxu0
        %435 = vmatprep.subr.mxu0 %v212
        %436 = vmatpush1.xpose.msra.mxu0 %v211
        %437 = vmatprep.subr.mxu0 0.0
        %438 = vmatpush1.xpose.msra.mxu0 0.0
        %439 = vmatprep.subr.mxu0 0.0
        %440 = vmatpush1.xpose.msra.mxu0 0.0
        %441 = vmatprep.subr.mxu0 0.0
        %442 = vmatpush1.xpose.msra.mxu0 0.0
        %443 = vmatprep.subr.mxu0 0.0
        %444 = vmatpush1.xpose.msra.mxu0 0.0
        %445 = vmatprep.subr.mxu0 0.0
        %446 = vmatpush1.xpose.msra.mxu0 0.0
        %447 = vmatprep.subr.mxu0 0.0
        %448 = vmatpush1.xpose.msra.mxu0 0.0
        %449 = vmatprep.subr.mxu0 0.0
        %450 = vmatpush1.xpose.msra.mxu0 0.0
        %451 = vmatprep.subr.mxu0 0.0
        %452 = vmatpush1.xpose.msra.mxu0 0.0
        %453 = vmatprep.subr.mxu0 0.0
        %454 = vmatpush1.xpose.msra.mxu0 0.0
        %455 = vmatprep.subr.mxu0 0.0
        %456 = vmatpush1.xpose.msra.mxu0 0.0
        %457 = vmatprep.subr.mxu0 0.0
        %458 = vmatpush1.xpose.msra.mxu0 0.0
        %459 = vmatprep.subr.mxu0 0.0
        %460 = vmatpush1.xpose.msra.mxu0 0.0
        %461 = vmatprep.subr.mxu0 0.0
        %462 = vmatpush1.xpose.msra.mxu0 0.0
        %463 = vmatprep.subr.mxu0 0.0
        %464 = vmatpush1.xpose.msra.mxu0 0.0
        %465 = vmatprep.subr.mxu0 0.0
        %466 = vmatpush1.xpose.msra.mxu0 0.0
        %467 = vmatprep.subr.mxu0 0.0
        %468 = vmatpush1.xpose.msra.mxu0 0.0
        %469 = vmatprep.subr.mxu0 0.0
        %470 = vmatpush1.xpose.msra.mxu0 0.0
        %471 = vmatprep.subr.mxu0 0.0
        %472 = vmatpush1.xpose.msra.mxu0 0.0
        %473 = vmatprep.subr.mxu0 0.0
        %474 = vmatpush1.xpose.msra.mxu0 0.0
        %475 = vmatprep.subr.mxu0 0.0
        %476 = vmatpush1.xpose.msra.mxu0 0.0
        %477 = vmatprep.subr.mxu0 0.0
        %478 = vmatpush1.xpose.msra.mxu0 0.0
        %479 = vmatprep.subr.mxu0 0.0
        %480 = vmatpush1.xpose.msra.mxu0 0.0
        %481 = vmatprep.subr.mxu0 0.0
        %482 = vmatpush1.xpose.msra.mxu0 0.0
        %483 = vmatprep.subr.mxu0 0.0
        %484 = vmatpush1.xpose.msra.mxu0 0.0
        %485 = vmatprep.subr.mxu0 0.0
        %486 = vmatpush1.xpose.msra.mxu0 0.0
        %487 = vmatprep.subr.mxu0 0.0
        %488 = vmatpush1.xpose.msra.mxu0 0.0
        %489 = vmatprep.subr.mxu0 0.0
        %490 = vmatpush1.xpose.msra.mxu0 0.0
        %491 = vmatprep.subr.mxu0 0.0
        %492 = vmatpush1.xpose.msra.mxu0 0.0
        %493 = vmatprep.subr.mxu0 0.0
        %494 = vmatpush1.xpose.msra.mxu0 0.0
        %495 = vmatprep.subr.mxu0 0.0
        %496 = vmatpush1.xpose.msra.mxu0 0.0
        %497 = vmatprep.subr.mxu0 0.0
        %498 = vmatpush1.xpose.msra.mxu0 0.0
        %499 = vmatprep.mubr.f32.mxu0 %v255
        %500 = vmatmul.mubr.f32.gmra.mrb[0].mxu0 %v253
        %v501 = vpop.f32.mrb[0].mxu0
        %v502 = vadd.f32 %v432, %v501
        %v503 = vpop.f32.mrb[0].mxu0
        %504 = vdwg.mxu0
        %505 = vmatprep.subr.mxu0 %v214
        %506 = vmatpush1.xpose.msra.mxu0 %v213
        %507 = vmatprep.subr.mxu0 0.0
        %508 = vmatpush1.xpose.msra.mxu0 0.0
        %509 = vmatprep.subr.mxu0 0.0
        %510 = vmatpush1.xpose.msra.mxu0 0.0
        %511 = vmatprep.subr.mxu0 0.0
        %512 = vmatpush1.xpose.msra.mxu0 0.0
        %513 = vmatprep.subr.mxu0 0.0
        %514 = vmatpush1.xpose.msra.mxu0 0.0
        %515 = vmatprep.subr.mxu0 0.0
        %516 = vmatpush1.xpose.msra.mxu0 0.0
        %517 = vmatprep.subr.mxu0 0.0
        %518 = vmatpush1.xpose.msra.mxu0 0.0
        %519 = vmatprep.subr.mxu0 0.0
        %520 = vmatpush1.xpose.msra.mxu0 0.0
        %521 = vmatprep.subr.mxu0 0.0
        %522 = vmatpush1.xpose.msra.mxu0 0.0
        %523 = vmatprep.subr.mxu0 0.0
        %524 = vmatpush1.xpose.msra.mxu0 0.0
        %525 = vmatprep.subr.mxu0 0.0
        %526 = vmatpush1.xpose.msra.mxu0 0.0
        %527 = vmatprep.subr.mxu0 0.0
        %528 = vmatpush1.xpose.msra.mxu0 0.0
        %529 = vmatprep.subr.mxu0 0.0
        %530 = vmatpush1.xpose.msra.mxu0 0.0
        %531 = vmatprep.subr.mxu0 0.0
        %532 = vmatpush1.xpose.msra.mxu0 0.0
        %533 = vmatprep.subr.mxu0 0.0
        %534 = vmatpush1.xpose.msra.mxu0 0.0
        %535 = vmatprep.subr.mxu0 0.0
        %536 = vmatpush1.xpose.msra.mxu0 0.0
        %537 = vmatprep.subr.mxu0 0.0
        %538 = vmatpush1.xpose.msra.mxu0 0.0
        %539 = vmatprep.subr.mxu0 0.0
        %540 = vmatpush1.xpose.msra.mxu0 0.0
        %541 = vmatprep.subr.mxu0 0.0
        %542 = vmatpush1.xpose.msra.mxu0 0.0
        %543 = vmatprep.subr.mxu0 0.0
        %544 = vmatpush1.xpose.msra.mxu0 0.0
        %545 = vmatprep.subr.mxu0 0.0
        %546 = vmatpush1.xpose.msra.mxu0 0.0
        %547 = vmatprep.subr.mxu0 0.0
        %548 = vmatpush1.xpose.msra.mxu0 0.0
        %549 = vmatprep.subr.mxu0 0.0
        %550 = vmatpush1.xpose.msra.mxu0 0.0
        %551 = vmatprep.subr.mxu0 0.0
        %552 = vmatpush1.xpose.msra.mxu0 0.0
        %553 = vmatprep.subr.mxu0 0.0
        %554 = vmatpush1.xpose.msra.mxu0 0.0
        %555 = vmatprep.subr.mxu0 0.0
        %556 = vmatpush1.xpose.msra.mxu0 0.0
        %557 = vmatprep.subr.mxu0 0.0
        %558 = vmatpush1.xpose.msra.mxu0 0.0
        %559 = vmatprep.subr.mxu0 0.0
        %560 = vmatpush1.xpose.msra.mxu0 0.0
        %561 = vmatprep.subr.mxu0 0.0
        %562 = vmatpush1.xpose.msra.mxu0 0.0
        %563 = vmatprep.subr.mxu0 0.0
        %564 = vmatpush1.xpose.msra.mxu0 0.0
        %565 = vmatprep.subr.mxu0 0.0
        %566 = vmatpush1.xpose.msra.mxu0 0.0
        %567 = vmatprep.subr.mxu0 0.0
        %568 = vmatpush1.xpose.msra.mxu0 0.0
        %569 = vmatprep.mubr.f32.mxu0 %v271
        %570 = vmatmul.mubr.f32.gmra.mrb[0].mxu0 %v263
        %v571 = vpop.f32.mrb[0].mxu0
        %v572 = vadd.f32 %v502, %v571
        %v573 = vpop.f32.mrb[0].mxu0
        %574 = vdwg.mxu0
        %575 = vmatprep.subr.mxu0 %v216
        %576 = vmatpush1.xpose.msra.mxu0 %v215
        %577 = vmatprep.subr.mxu0 0.0
        %578 = vmatpush1.xpose.msra.mxu0 0.0
        %579 = vmatprep.subr.mxu0 0.0
        %580 = vmatpush1.xpose.msra.mxu0 0.0
        %581 = vmatprep.subr.mxu0 0.0
        %582 = vmatpush1.xpose.msra.mxu0 0.0
        %583 = vmatprep.subr.mxu0 0.0
        %584 = vmatpush1.xpose.msra.mxu0 0.0
        %585 = vmatprep.subr.mxu0 0.0
        %586 = vmatpush1.xpose.msra.mxu0 0.0
        %587 = vmatprep.subr.mxu0 0.0
        %588 = vmatpush1.xpose.msra.mxu0 0.0
        %589 = vmatprep.subr.mxu0 0.0
        %590 = vmatpush1.xpose.msra.mxu0 0.0
        %591 = vmatprep.subr.mxu0 0.0
        %592 = vmatpush1.xpose.msra.mxu0 0.0
        %593 = vmatprep.subr.mxu0 0.0
        %594 = vmatpush1.xpose.msra.mxu0 0.0
        %595 = vmatprep.subr.mxu0 0.0
        %596 = vmatpush1.xpose.msra.mxu0 0.0
        %597 = vmatprep.subr.mxu0 0.0
        %598 = vmatpush1.xpose.msra.mxu0 0.0
        %599 = vmatprep.subr.mxu0 0.0
        %600 = vmatpush1.xpose.msra.mxu0 0.0
        %601 = vmatprep.subr.mxu0 0.0
        %602 = vmatpush1.xpose.msra.mxu0 0.0
        %603 = vmatprep.subr.mxu0 0.0
        %604 = vmatpush1.xpose.msra.mxu0 0.0
        %605 = vmatprep.subr.mxu0 0.0
        %606 = vmatpush1.xpose.msra.mxu0 0.0
        %607 = vmatprep.subr.mxu0 0.0
        %608 = vmatpush1.xpose.msra.mxu0 0.0
        %609 = vmatprep.subr.mxu0 0.0
        %610 = vmatpush1.xpose.msra.mxu0 0.0
        %611 = vmatprep.subr.mxu0 0.0
        %612 = vmatpush1.xpose.msra.mxu0 0.0
        %613 = vmatprep.subr.mxu0 0.0
        %614 = vmatpush1.xpose.msra.mxu0 0.0
        %615 = vmatprep.subr.mxu0 0.0
        %616 = vmatpush1.xpose.msra.mxu0 0.0
        %617 = vmatprep.subr.mxu0 0.0
        %618 = vmatpush1.xpose.msra.mxu0 0.0
        %619 = vmatprep.subr.mxu0 0.0
        %620 = vmatpush1.xpose.msra.mxu0 0.0
        %621 = vmatprep.subr.mxu0 0.0
        %622 = vmatpush1.xpose.msra.mxu0 0.0
        %623 = vmatprep.subr.mxu0 0.0
        %624 = vmatpush1.xpose.msra.mxu0 0.0
        %625 = vmatprep.subr.mxu0 0.0
        %626 = vmatpush1.xpose.msra.mxu0 0.0
        %627 = vmatprep.subr.mxu0 0.0
        %628 = vmatpush1.xpose.msra.mxu0 0.0
        %629 = vmatprep.subr.mxu0 0.0
        %630 = vmatpush1.xpose.msra.mxu0 0.0
        %631 = vmatprep.subr.mxu0 0.0
        %632 = vmatpush1.xpose.msra.mxu0 0.0
        %633 = vmatprep.subr.mxu0 0.0
        %634 = vmatpush1.xpose.msra.mxu0 0.0
        %635 = vmatprep.subr.mxu0 0.0
        %636 = vmatpush1.xpose.msra.mxu0 0.0
        %637 = vmatprep.subr.mxu0 0.0
        %638 = vmatpush1.xpose.msra.mxu0 0.0
        %639 = vmatprep.mubr.f32.mxu0 %v272
        %640 = vmatmul.mubr.f32.gmra.mrb[0].mxu0 %v270
        %v641 = vpop.f32.mrb[0].mxu0
        %v642 = vadd.f32 %v572, %v641
        %v643 = vpop.f32.mrb[0].mxu0
        %644 = vdwg.mxu0
        %645 = vmatprep.subr.mxu0 %v218
        %646 = vmatpush1.xpose.msra.mxu0 %v217
        %647 = vmatprep.subr.mxu0 0.0
        %648 = vmatpush1.xpose.msra.mxu0 0.0
        %649 = vmatprep.subr.mxu0 0.0
        %650 = vmatpush1.xpose.msra.mxu0 0.0
        %651 = vmatprep.subr.mxu0 0.0
        %652 = vmatpush1.xpose.msra.mxu0 0.0
        %653 = vmatprep.subr.mxu0 0.0
        %654 = vmatpush1.xpose.msra.mxu0 0.0
        %655 = vmatprep.subr.mxu0 0.0
        %656 = vmatpush1.xpose.msra.mxu0 0.0
        %657 = vmatprep.subr.mxu0 0.0
        %658 = vmatpush1.xpose.msra.mxu0 0.0
        %659 = vmatprep.subr.mxu0 0.0
        %660 = vmatpush1.xpose.msra.mxu0 0.0
        %661 = vmatprep.subr.mxu0 0.0
        %662 = vmatpush1.xpose.msra.mxu0 0.0
        %663 = vmatprep.subr.mxu0 0.0
        %664 = vmatpush1.xpose.msra.mxu0 0.0
        %665 = vmatprep.subr.mxu0 0.0
        %666 = vmatpush1.xpose.msra.mxu0 0.0
        %667 = vmatprep.subr.mxu0 0.0
        %668 = vmatpush1.xpose.msra.mxu0 0.0
        %669 = vmatprep.subr.mxu0 0.0
        %670 = vmatpush1.xpose.msra.mxu0 0.0
        %671 = vmatprep.subr.mxu0 0.0
        %672 = vmatpush1.xpose.msra.mxu0 0.0
        %673 = vmatprep.subr.mxu0 0.0
        %674 = vmatpush1.xpose.msra.mxu0 0.0
        %675 = vmatprep.subr.mxu0 0.0
        %676 = vmatpush1.xpose.msra.mxu0 0.0
        %677 = vmatprep.subr.mxu0 0.0
        %678 = vmatpush1.xpose.msra.mxu0 0.0
        %679 = vmatprep.subr.mxu0 0.0
        %680 = vmatpush1.xpose.msra.mxu0 0.0
        %681 = vmatprep.subr.mxu0 0.0
        %682 = vmatpush1.xpose.msra.mxu0 0.0
        %683 = vmatprep.subr.mxu0 0.0
        %684 = vmatpush1.xpose.msra.mxu0 0.0
        %685 = vmatprep.subr.mxu0 0.0
        %686 = vmatpush1.xpose.msra.mxu0 0.0
        %687 = vmatprep.subr.mxu0 0.0
        %688 = vmatpush1.xpose.msra.mxu0 0.0
        %689 = vmatprep.subr.mxu0 0.0
        %690 = vmatpush1.xpose.msra.mxu0 0.0
        %691 = vmatprep.subr.mxu0 0.0
        %692 = vmatpush1.xpose.msra.mxu0 0.0
        %693 = vmatprep.subr.mxu0 0.0
        %694 = vmatpush1.xpose.msra.mxu0 0.0
        %695 = vmatprep.subr.mxu0 0.0
        %696 = vmatpush1.xpose.msra.mxu0 0.0
        %697 = vmatprep.subr.mxu0 0.0
        %698 = vmatpush1.xpose.msra.mxu0 0.0
        %699 = vmatprep.subr.mxu0 0.0
        %700 = vmatpush1.xpose.msra.mxu0 0.0
        %701 = vmatprep.subr.mxu0 0.0
        %702 = vmatpush1.xpose.msra.mxu0 0.0
        %703 = vmatprep.subr.mxu0 0.0
        %704 = vmatpush1.xpose.msra.mxu0 0.0
        %705 = vmatprep.subr.mxu0 0.0
        %706 = vmatpush1.xpose.msra.mxu0 0.0
        %707 = vmatprep.subr.mxu0 0.0
        %708 = vmatpush1.xpose.msra.mxu0 0.0
        %709 = vmatprep.mubr.f32.mxu0 %v288
        %710 = vmatmul.mubr.f32.gmra.mrb[0].mxu0 %v280
        %v711 = vpop.f32.mrb[0].mxu0
        %v712 = vadd.f32 %v642, %v711
        %v713 = vpop.f32.mrb[0].mxu0
        %714 = vdwg.mxu0
        %715 = vmatprep.subr.mxu0 %v220
        %716 = vmatpush1.xpose.msra.mxu0 %v219
        %717 = vmatprep.subr.mxu0 0.0
        %718 = vmatpush1.xpose.msra.mxu0 0.0
        %719 = vmatprep.subr.mxu0 0.0
        %720 = vmatpush1.xpose.msra.mxu0 0.0
        %721 = vmatprep.subr.mxu0 0.0
        %722 = vmatpush1.xpose.msra.mxu0 0.0
        %723 = vmatprep.subr.mxu0 0.0
        %724 = vmatpush1.xpose.msra.mxu0 0.0
        %725 = vmatprep.subr.mxu0 0.0
        %726 = vmatpush1.xpose.msra.mxu0 0.0
        %727 = vmatprep.subr.mxu0 0.0
        %728 = vmatpush1.xpose.msra.mxu0 0.0
        %729 = vmatprep.subr.mxu0 0.0
        %730 = vmatpush1.xpose.msra.mxu0 0.0
        %731 = vmatprep.subr.mxu0 0.0
        %732 = vmatpush1.xpose.msra.mxu0 0.0
        %733 = vmatprep.subr.mxu0 0.0
        %734 = vmatpush1.xpose.msra.mxu0 0.0
        %735 = vmatprep.subr.mxu0 0.0
        %736 = vmatpush1.xpose.msra.mxu0 0.0
        %737 = vmatprep.subr.mxu0 0.0
        %738 = vmatpush1.xpose.msra.mxu0 0.0
        %739 = vmatprep.subr.mxu0 0.0
        %740 = vmatpush1.xpose.msra.mxu0 0.0
        %741 = vmatprep.subr.mxu0 0.0
        %742 = vmatpush1.xpose.msra.mxu0 0.0
        %743 = vmatprep.subr.mxu0 0.0
        %744 = vmatpush1.xpose.msra.mxu0 0.0
        %745 = vmatprep.subr.mxu0 0.0
        %746 = vmatpush1.xpose.msra.mxu0 0.0
        %747 = vmatprep.subr.mxu0 0.0
        %748 = vmatpush1.xpose.msra.mxu0 0.0
        %749 = vmatprep.subr.mxu0 0.0
        %750 = vmatpush1.xpose.msra.mxu0 0.0
        %751 = vmatprep.subr.mxu0 0.0
        %752 = vmatpush1.xpose.msra.mxu0 0.0
        %753 = vmatprep.subr.mxu0 0.0
        %754 = vmatpush1.xpose.msra.mxu0 0.0
        %755 = vmatprep.subr.mxu0 0.0
        %756 = vmatpush1.xpose.msra.mxu0 0.0
        %757 = vmatprep.subr.mxu0 0.0
        %758 = vmatpush1.xpose.msra.mxu0 0.0
        %759 = vmatprep.subr.mxu0 0.0
        %760 = vmatpush1.xpose.msra.mxu0 0.0
        %761 = vmatprep.subr.mxu0 0.0
        %762 = vmatpush1.xpose.msra.mxu0 0.0
        %763 = vmatprep.subr.mxu0 0.0
        %764 = vmatpush1.xpose.msra.mxu0 0.0
        %765 = vmatprep.subr.mxu0 0.0
        %766 = vmatpush1.xpose.msra.mxu0 0.0
        %767 = vmatprep.subr.mxu0 0.0
        %768 = vmatpush1.xpose.msra.mxu0 0.0
        %769 = vmatprep.subr.mxu0 0.0
        %770 = vmatpush1.xpose.msra.mxu0 0.0
        %771 = vmatprep.subr.mxu0 0.0
        %772 = vmatpush1.xpose.msra.mxu0 0.0
        %773 = vmatprep.subr.mxu0 0.0
        %774 = vmatpush1.xpose.msra.mxu0 0.0
        %775 = vmatprep.subr.mxu0 0.0
        %776 = vmatpush1.xpose.msra.mxu0 0.0
        %777 = vmatprep.subr.mxu0 0.0
        %778 = vmatpush1.xpose.msra.mxu0 0.0
        %779 = vmatprep.mubr.f32.mxu0 %v289
        %780 = vmatmul.mubr.f32.gmra.mrb[0].mxu0 %v287
        %v781 = vpop.f32.mrb[0].mxu0
        %v782 = vadd.f32 %v712, %v781
        %v783 = vpop.f32.mrb[0].mxu0
        %784 = vdwg.mxu0
        %785 = vmatprep.subr.mxu0 %v222
        %786 = vmatpush1.xpose.msra.mxu0 %v221
        %787 = vmatprep.subr.mxu0 0.0
        %788 = vmatpush1.xpose.msra.mxu0 0.0
        %789 = vmatprep.subr.mxu0 0.0
        %790 = vmatpush1.xpose.msra.mxu0 0.0
        %791 = vmatprep.subr.mxu0 0.0
        %792 = vmatpush1.xpose.msra.mxu0 0.0
        %793 = vmatprep.subr.mxu0 0.0
        %794 = vmatpush1.xpose.msra.mxu0 0.0
        %795 = vmatprep.subr.mxu0 0.0
        %796 = vmatpush1.xpose.msra.mxu0 0.0
        %797 = vmatprep.subr.mxu0 0.0
        %798 = vmatpush1.xpose.msra.mxu0 0.0
        %799 = vmatprep.subr.mxu0 0.0
        %800 = vmatpush1.xpose.msra.mxu0 0.0
        %801 = vmatprep.subr.mxu0 0.0
        %802 = vmatpush1.xpose.msra.mxu0 0.0
        %803 = vmatprep.subr.mxu0 0.0
        %804 = vmatpush1.xpose.msra.mxu0 0.0
        %805 = vmatprep.subr.mxu0 0.0
        %806 = vmatpush1.xpose.msra.mxu0 0.0
        %807 = vmatprep.subr.mxu0 0.0
        %808 = vmatpush1.xpose.msra.mxu0 0.0
        %809 = vmatprep.subr.mxu0 0.0
        %810 = vmatpush1.xpose.msra.mxu0 0.0
        %811 = vmatprep.subr.mxu0 0.0
        %812 = vmatpush1.xpose.msra.mxu0 0.0
        %813 = vmatprep.subr.mxu0 0.0
        %814 = vmatpush1.xpose.msra.mxu0 0.0
        %815 = vmatprep.subr.mxu0 0.0
        %816 = vmatpush1.xpose.msra.mxu0 0.0
        %817 = vmatprep.subr.mxu0 0.0
        %818 = vmatpush1.xpose.msra.mxu0 0.0
        %819 = vmatprep.subr.mxu0 0.0
        %820 = vmatpush1.xpose.msra.mxu0 0.0
        %821 = vmatprep.subr.mxu0 0.0
        %822 = vmatpush1.xpose.msra.mxu0 0.0
        %823 = vmatprep.subr.mxu0 0.0
        %824 = vmatpush1.xpose.msra.mxu0 0.0
        %825 = vmatprep.subr.mxu0 0.0
        %826 = vmatpush1.xpose.msra.mxu0 0.0
        %827 = vmatprep.subr.mxu0 0.0
        %828 = vmatpush1.xpose.msra.mxu0 0.0
        %829 = vmatprep.subr.mxu0 0.0
        %830 = vmatpush1.xpose.msra.mxu0 0.0
        %831 = vmatprep.subr.mxu0 0.0
        %832 = vmatpush1.xpose.msra.mxu0 0.0
        %833 = vmatprep.subr.mxu0 0.0
        %834 = vmatpush1.xpose.msra.mxu0 0.0
        %835 = vmatprep.subr.mxu0 0.0
        %836 = vmatpush1.xpose.msra.mxu0 0.0
        %837 = vmatprep.subr.mxu0 0.0
        %838 = vmatpush1.xpose.msra.mxu0 0.0
        %839 = vmatprep.subr.mxu0 0.0
        %840 = vmatpush1.xpose.msra.mxu0 0.0
        %841 = vmatprep.subr.mxu0 0.0
        %842 = vmatpush1.xpose.msra.mxu0 0.0
        %843 = vmatprep.subr.mxu0 0.0
        %844 = vmatpush1.xpose.msra.mxu0 0.0
        %845 = vmatprep.subr.mxu0 0.0
        %846 = vmatpush1.xpose.msra.mxu0 0.0
        %847 = vmatprep.subr.mxu0 0.0
        %848 = vmatpush1.xpose.msra.mxu0 0.0
        %849 = vmatprep.mubr.f32.mxu0 %v305
        %850 = vmatmul.mubr.f32.gmra.mrb[0].mxu0 %v297
        %v851 = vpop.f32.mrb[0].mxu0
        %v852 = vadd.f32 %v782, %v851
        %v853 = vpop.f32.mrb[0].mxu0
        %854 = vdwg.mxu0
        %855 = vmatprep.subr.mxu0 %v224
        %856 = vmatpush1.xpose.msra.mxu0 %v223
        %857 = vmatprep.subr.mxu0 0.0
        %858 = vmatpush1.xpose.msra.mxu0 0.0
        %859 = vmatprep.subr.mxu0 0.0
        %860 = vmatpush1.xpose.msra.mxu0 0.0
        %861 = vmatprep.subr.mxu0 0.0
        %862 = vmatpush1.xpose.msra.mxu0 0.0
        %863 = vmatprep.subr.mxu0 0.0
        %864 = vmatpush1.xpose.msra.mxu0 0.0
        %865 = vmatprep.subr.mxu0 0.0
        %866 = vmatpush1.xpose.msra.mxu0 0.0
        %867 = vmatprep.subr.mxu0 0.0
        %868 = vmatpush1.xpose.msra.mxu0 0.0
        %869 = vmatprep.subr.mxu0 0.0
        %870 = vmatpush1.xpose.msra.mxu0 0.0
        %871 = vmatprep.subr.mxu0 0.0
        %872 = vmatpush1.xpose.msra.mxu0 0.0
        %873 = vmatprep.subr.mxu0 0.0
        %874 = vmatpush1.xpose.msra.mxu0 0.0
        %875 = vmatprep.subr.mxu0 0.0
        %876 = vmatpush1.xpose.msra.mxu0 0.0
        %877 = vmatprep.subr.mxu0 0.0
        %878 = vmatpush1.xpose.msra.mxu0 0.0
        %879 = vmatprep.subr.mxu0 0.0
        %880 = vmatpush1.xpose.msra.mxu0 0.0
        %881 = vmatprep.subr.mxu0 0.0
        %882 = vmatpush1.xpose.msra.mxu0 0.0
        %883 = vmatprep.subr.mxu0 0.0
        %884 = vmatpush1.xpose.msra.mxu0 0.0
        %885 = vmatprep.subr.mxu0 0.0
        %886 = vmatpush1.xpose.msra.mxu0 0.0
        %887 = vmatprep.subr.mxu0 0.0
        %888 = vmatpush1.xpose.msra.mxu0 0.0
        %889 = vmatprep.subr.mxu0 0.0
        %890 = vmatpush1.xpose.msra.mxu0 0.0
        %891 = vmatprep.subr.mxu0 0.0
        %892 = vmatpush1.xpose.msra.mxu0 0.0
        %893 = vmatprep.subr.mxu0 0.0
        %894 = vmatpush1.xpose.msra.mxu0 0.0
        %895 = vmatprep.subr.mxu0 0.0
        %896 = vmatpush1.xpose.msra.mxu0 0.0
        %897 = vmatprep.subr.mxu0 0.0
        %898 = vmatpush1.xpose.msra.mxu0 0.0
        %899 = vmatprep.subr.mxu0 0.0
        %900 = vmatpush1.xpose.msra.mxu0 0.0
        %901 = vmatprep.subr.mxu0 0.0
        %902 = vmatpush1.xpose.msra.mxu0 0.0
        %903 = vmatprep.subr.mxu0 0.0
        %904 = vmatpush1.xpose.msra.mxu0 0.0
        %905 = vmatprep.subr.mxu0 0.0
        %906 = vmatpush1.xpose.msra.mxu0 0.0
        %907 = vmatprep.subr.mxu0 0.0
        %908 = vmatpush1.xpose.msra.mxu0 0.0
        %909 = vmatprep.subr.mxu0 0.0
        %910 = vmatpush1.xpose.msra.mxu0 0.0
        %911 = vmatprep.subr.mxu0 0.0
        %912 = vmatpush1.xpose.msra.mxu0 0.0
        %913 = vmatprep.subr.mxu0 0.0
        %914 = vmatpush1.xpose.msra.mxu0 0.0
        %915 = vmatprep.subr.mxu0 0.0
        %916 = vmatpush1.xpose.msra.mxu0 0.0
        %917 = vmatprep.subr.mxu0 0.0
        %918 = vmatpush1.xpose.msra.mxu0 0.0
        %919 = vmatprep.mubr.f32.mxu0 %v306
        %920 = vmatmul.mubr.f32.gmra.mrb[0].mxu0 %v304
        %v921 = vpop.f32.mrb[0].mxu0
        %v922 = vadd.f32 %v852, %v921
        %v923 = vpop.f32.mrb[0].mxu0
        %924 = vdwg.mxu0
        %925 = vmatprep.subr.mxu0 %v226
        %926 = vmatpush1.xpose.msra.mxu0 %v225
        %927 = vmatprep.subr.mxu0 0.0
        %928 = vmatpush1.xpose.msra.mxu0 0.0
        %929 = vmatprep.subr.mxu0 0.0
        %930 = vmatpush1.xpose.msra.mxu0 0.0
        %931 = vmatprep.subr.mxu0 0.0
        %932 = vmatpush1.xpose.msra.mxu0 0.0
        %933 = vmatprep.subr.mxu0 0.0
        %934 = vmatpush1.xpose.msra.mxu0 0.0
        %935 = vmatprep.subr.mxu0 0.0
        %936 = vmatpush1.xpose.msra.mxu0 0.0
        %937 = vmatprep.subr.mxu0 0.0
        %938 = vmatpush1.xpose.msra.mxu0 0.0
        %939 = vmatprep.subr.mxu0 0.0
        %940 = vmatpush1.xpose.msra.mxu0 0.0
        %941 = vmatprep.subr.mxu0 0.0
        %942 = vmatpush1.xpose.msra.mxu0 0.0
        %943 = vmatprep.subr.mxu0 0.0
        %944 = vmatpush1.xpose.msra.mxu0 0.0
        %945 = vmatprep.subr.mxu0 0.0
        %946 = vmatpush1.xpose.msra.mxu0 0.0
        %947 = vmatprep.subr.mxu0 0.0
        %948 = vmatpush1.xpose.msra.mxu0 0.0
        %949 = vmatprep.subr.mxu0 0.0
        %950 = vmatpush1.xpose.msra.mxu0 0.0
        %951 = vmatprep.subr.mxu0 0.0
        %952 = vmatpush1.xpose.msra.mxu0 0.0
        %953 = vmatprep.subr.mxu0 0.0
        %954 = vmatpush1.xpose.msra.mxu0 0.0
        %955 = vmatprep.subr.mxu0 0.0
        %956 = vmatpush1.xpose.msra.mxu0 0.0
        %957 = vmatprep.subr.mxu0 0.0
        %958 = vmatpush1.xpose.msra.mxu0 0.0
        %959 = vmatprep.subr.mxu0 0.0
        %960 = vmatpush1.xpose.msra.mxu0 0.0
        %961 = vmatprep.subr.mxu0 0.0
        %962 = vmatpush1.xpose.msra.mxu0 0.0
        %963 = vmatprep.subr.mxu0 0.0
        %964 = vmatpush1.xpose.msra.mxu0 0.0
        %965 = vmatprep.subr.mxu0 0.0
        %966 = vmatpush1.xpose.msra.mxu0 0.0
        %967 = vmatprep.subr.mxu0 0.0
        %968 = vmatpush1.xpose.msra.mxu0 0.0
        %969 = vmatprep.subr.mxu0 0.0
        %970 = vmatpush1.xpose.msra.mxu0 0.0
        %971 = vmatprep.subr.mxu0 0.0
        %972 = vmatpush1.xpose.msra.mxu0 0.0
        %973 = vmatprep.subr.mxu0 0.0
        %974 = vmatpush1.xpose.msra.mxu0 0.0
        %975 = vmatprep.subr.mxu0 0.0
        %976 = vmatpush1.xpose.msra.mxu0 0.0
        %977 = vmatprep.subr.mxu0 0.0
        %978 = vmatpush1.xpose.msra.mxu0 0.0
        %979 = vmatprep.subr.mxu0 0.0
        %980 = vmatpush1.xpose.msra.mxu0 0.0
        %981 = vmatprep.subr.mxu0 0.0
        %982 = vmatpush1.xpose.msra.mxu0 0.0
        %983 = vmatprep.subr.mxu0 0.0
        %984 = vmatpush1.xpose.msra.mxu0 0.0
        %985 = vmatprep.subr.mxu0 0.0
        %986 = vmatpush1.xpose.msra.mxu0 0.0
        %987 = vmatprep.subr.mxu0 0.0
        %988 = vmatpush1.xpose.msra.mxu0 0.0
        %989 = vmatprep.mubr.f32.mxu0 %v322
        %990 = vmatmul.mubr.f32.gmra.mrb[0].mxu0 %v314
        %v991 = vpop.f32.mrb[0].mxu0
        %v992 = vadd.f32 %v922, %v991
        %v993 = vpop.f32.mrb[0].mxu0
        %994 = vdwg.mxu0
        %995 = vmatprep.subr.mxu0 %v228
        %996 = vmatpush1.xpose.msra.mxu0 %v227
        %997 = vmatprep.subr.mxu0 0.0
        %998 = vmatpush1.xpose.msra.mxu0 0.0
        %999 = vmatprep.subr.mxu0 0.0
        %1000 = vmatpush1.xpose.msra.mxu0 0.0
        %1001 = vmatprep.subr.mxu0 0.0
        %1002 = vmatpush1.xpose.msra.mxu0 0.0
        %1003 = vmatprep.subr.mxu0 0.0
        %1004 = vmatpush1.xpose.msra.mxu0 0.0
        %1005 = vmatprep.subr.mxu0 0.0
        %1006 = vmatpush1.xpose.msra.mxu0 0.0
        %1007 = vmatprep.subr.mxu0 0.0
        %1008 = vmatpush1.xpose.msra.mxu0 0.0
        %1009 = vmatprep.subr.mxu0 0.0
        %1010 = vmatpush1.xpose.msra.mxu0 0.0
        %1011 = vmatprep.subr.mxu0 0.0
        %1012 = vmatpush1.xpose.msra.mxu0 0.0
        %1013 = vmatprep.subr.mxu0 0.0
        %1014 = vmatpush1.xpose.msra.mxu0 0.0
        %1015 = vmatprep.subr.mxu0 0.0
        %1016 = vmatpush1.xpose.msra.mxu0 0.0
        %1017 = vmatprep.subr.mxu0 0.0
        %1018 = vmatpush1.xpose.msra.mxu0 0.0
        %1019 = vmatprep.subr.mxu0 0.0
        %1020 = vmatpush1.xpose.msra.mxu0 0.0
        %1021 = vmatprep.subr.mxu0 0.0
        %1022 = vmatpush1.xpose.msra.mxu0 0.0
        %1023 = vmatprep.subr.mxu0 0.0
        %1024 = vmatpush1.xpose.msra.mxu0 0.0
        %1025 = vmatprep.subr.mxu0 0.0
        %1026 = vmatpush1.xpose.msra.mxu0 0.0
        %1027 = vmatprep.subr.mxu0 0.0
        %1028 = vmatpush1.xpose.msra.mxu0 0.0
        %1029 = vmatprep.subr.mxu0 0.0
        %1030 = vmatpush1.xpose.msra.mxu0 0.0
        %1031 = vmatprep.subr.mxu0 0.0
        %1032 = vmatpush1.xpose.msra.mxu0 0.0
        %1033 = vmatprep.subr.mxu0 0.0
        %1034 = vmatpush1.xpose.msra.mxu0 0.0
        %1035 = vmatprep.subr.mxu0 0.0
        %1036 = vmatpush1.xpose.msra.mxu0 0.0
        %1037 = vmatprep.subr.mxu0 0.0
        %1038 = vmatpush1.xpose.msra.mxu0 0.0
        %1039 = vmatprep.subr.mxu0 0.0
        %1040 = vmatpush1.xpose.msra.mxu0 0.0
        %1041 = vmatprep.subr.mxu0 0.0
        %1042 = vmatpush1.xpose.msra.mxu0 0.0
        %1043 = vmatprep.subr.mxu0 0.0
        %1044 = vmatpush1.xpose.msra.mxu0 0.0
        %1045 = vmatprep.subr.mxu0 0.0
        %1046 = vmatpush1.xpose.msra.mxu0 0.0
        %1047 = vmatprep.subr.mxu0 0.0
        %1048 = vmatpush1.xpose.msra.mxu0 0.0
        %1049 = vmatprep.subr.mxu0 0.0
        %1050 = vmatpush1.xpose.msra.mxu0 0.0
        %1051 = vmatprep.subr.mxu0 0.0
        %1052 = vmatpush1.xpose.msra.mxu0 0.0
        %1053 = vmatprep.subr.mxu0 0.0
        %1054 = vmatpush1.xpose.msra.mxu0 0.0
        %1055 = vmatprep.subr.mxu0 0.0
        %1056 = vmatpush1.xpose.msra.mxu0 0.0
        %1057 = vmatprep.subr.mxu0 0.0
        %1058 = vmatpush1.xpose.msra.mxu0 0.0
        %1059 = vmatprep.mubr.f32.mxu0 %v323
        %1060 = vmatmul.mubr.f32.gmra.mrb[0].mxu0 %v321
        %v1061 = vpop.f32.mrb[0].mxu0
        %v1062 = vadd.f32 %v992, %v1061
        %v1063 = vpop.f32.mrb[0].mxu0
        %1064 = vdwg.mxu0
        %1065 = vmatprep.subr.mxu0 %v230
        %1066 = vmatpush1.xpose.msra.mxu0 %v229
        %1067 = vmatprep.subr.mxu0 0.0
        %1068 = vmatpush1.xpose.msra.mxu0 0.0
        %1069 = vmatprep.subr.mxu0 0.0
        %1070 = vmatpush1.xpose.msra.mxu0 0.0
        %1071 = vmatprep.subr.mxu0 0.0
        %1072 = vmatpush1.xpose.msra.mxu0 0.0
        %1073 = vmatprep.subr.mxu0 0.0
        %1074 = vmatpush1.xpose.msra.mxu0 0.0
        %1075 = vmatprep.subr.mxu0 0.0
        %1076 = vmatpush1.xpose.msra.mxu0 0.0
        %1077 = vmatprep.subr.mxu0 0.0
        %1078 = vmatpush1.xpose.msra.mxu0 0.0
        %1079 = vmatprep.subr.mxu0 0.0
        %1080 = vmatpush1.xpose.msra.mxu0 0.0
        %1081 = vmatprep.subr.mxu0 0.0
        %1082 = vmatpush1.xpose.msra.mxu0 0.0
        %1083 = vmatprep.subr.mxu0 0.0
        %1084 = vmatpush1.xpose.msra.mxu0 0.0
        %1085 = vmatprep.subr.mxu0 0.0
        %1086 = vmatpush1.xpose.msra.mxu0 0.0
        %1087 = vmatprep.subr.mxu0 0.0
        %1088 = vmatpush1.xpose.msra.mxu0 0.0
        %1089 = vmatprep.subr.mxu0 0.0
        %1090 = vmatpush1.xpose.msra.mxu0 0.0
        %1091 = vmatprep.subr.mxu0 0.0
        %1092 = vmatpush1.xpose.msra.mxu0 0.0
        %1093 = vmatprep.subr.mxu0 0.0
        %1094 = vmatpush1.xpose.msra.mxu0 0.0
        %1095 = vmatprep.subr.mxu0 0.0
        %1096 = vmatpush1.xpose.msra.mxu0 0.0
        %1097 = vmatprep.subr.mxu0 0.0
        %1098 = vmatpush1.xpose.msra.mxu0 0.0
        %1099 = vmatprep.subr.mxu0 0.0
        %1100 = vmatpush1.xpose.msra.mxu0 0.0
        %1101 = vmatprep.subr.mxu0 0.0
        %1102 = vmatpush1.xpose.msra.mxu0 0.0
        %1103 = vmatprep.subr.mxu0 0.0
        %1104 = vmatpush1.xpose.msra.mxu0 0.0
        %1105 = vmatprep.subr.mxu0 0.0
        %1106 = vmatpush1.xpose.msra.mxu0 0.0
        %1107 = vmatprep.subr.mxu0 0.0
        %1108 = vmatpush1.xpose.msra.mxu0 0.0
        %1109 = vmatprep.subr.mxu0 0.0
        %1110 = vmatpush1.xpose.msra.mxu0 0.0
        %1111 = vmatprep.subr.mxu0 0.0
        %1112 = vmatpush1.xpose.msra.mxu0 0.0
        %1113 = vmatprep.subr.mxu0 0.0
        %1114 = vmatpush1.xpose.msra.mxu0 0.0
        %1115 = vmatprep.subr.mxu0 0.0
        %1116 = vmatpush1.xpose.msra.mxu0 0.0
        %1117 = vmatprep.subr.mxu0 0.0
        %1118 = vmatpush1.xpose.msra.mxu0 0.0
        %1119 = vmatprep.subr.mxu0 0.0
        %1120 = vmatpush1.xpose.msra.mxu0 0.0
        %1121 = vmatprep.subr.mxu0 0.0
        %1122 = vmatpush1.xpose.msra.mxu0 0.0
        %1123 = vmatprep.subr.mxu0 0.0
        %1124 = vmatpush1.xpose.msra.mxu0 0.0
        %1125 = vmatprep.subr.mxu0 0.0
        %1126 = vmatpush1.xpose.msra.mxu0 0.0
        %1127 = vmatprep.subr.mxu0 0.0
        %1128 = vmatpush1.xpose.msra.mxu0 0.0
        %1129 = vmatprep.mubr.f32.mxu0 %v339
        %1130 = vmatmul.mubr.f32.gmra.mrb[0].mxu0 %v331
        %v1131 = vpop.f32.mrb[0].mxu0
        %v1132 = vadd.f32 %v1062, %v1131
        %v1133 = vpop.f32.mrb[0].mxu0
        %1134 = vdwg.mxu0
        %1135 = vmatprep.subr.mxu0 %v232
        %1136 = vmatpush1.xpose.msra.mxu0 %v231
        %1137 = vmatprep.subr.mxu0 0.0
        %1138 = vmatpush1.xpose.msra.mxu0 0.0
        %1139 = vmatprep.subr.mxu0 0.0
        %1140 = vmatpush1.xpose.msra.mxu0 0.0
        %1141 = vmatprep.subr.mxu0 0.0
        %1142 = vmatpush1.xpose.msra.mxu0 0.0
        %1143 = vmatprep.subr.mxu0 0.0
        %1144 = vmatpush1.xpose.msra.mxu0 0.0
        %1145 = vmatprep.subr.mxu0 0.0
        %1146 = vmatpush1.xpose.msra.mxu0 0.0
        %1147 = vmatprep.subr.mxu0 0.0
        %1148 = vmatpush1.xpose.msra.mxu0 0.0
        %1149 = vmatprep.subr.mxu0 0.0
        %1150 = vmatpush1.xpose.msra.mxu0 0.0
        %1151 = vmatprep.subr.mxu0 0.0
        %1152 = vmatpush1.xpose.msra.mxu0 0.0
        %1153 = vmatprep.subr.mxu0 0.0
        %1154 = vmatpush1.xpose.msra.mxu0 0.0
        %1155 = vmatprep.subr.mxu0 0.0
        %1156 = vmatpush1.xpose.msra.mxu0 0.0
        %1157 = vmatprep.subr.mxu0 0.0
        %1158 = vmatpush1.xpose.msra.mxu0 0.0
        %1159 = vmatprep.subr.mxu0 0.0
        %1160 = vmatpush1.xpose.msra.mxu0 0.0
        %1161 = vmatprep.subr.mxu0 0.0
        %1162 = vmatpush1.xpose.msra.mxu0 0.0
        %1163 = vmatprep.subr.mxu0 0.0
        %1164 = vmatpush1.xpose.msra.mxu0 0.0
        %1165 = vmatprep.subr.mxu0 0.0
        %1166 = vmatpush1.xpose.msra.mxu0 0.0
        %1167 = vmatprep.subr.mxu0 0.0
        %1168 = vmatpush1.xpose.msra.mxu0 0.0
        %1169 = vmatprep.subr.mxu0 0.0
        %1170 = vmatpush1.xpose.msra.mxu0 0.0
        %1171 = vmatprep.subr.mxu0 0.0
        %1172 = vmatpush1.xpose.msra.mxu0 0.0
        %1173 = vmatprep.subr.mxu0 0.0
        %1174 = vmatpush1.xpose.msra.mxu0 0.0
        %1175 = vmatprep.subr.mxu0 0.0
        %1176 = vmatpush1.xpose.msra.mxu0 0.0
        %1177 = vmatprep.subr.mxu0 0.0
        %1178 = vmatpush1.xpose.msra.mxu0 0.0
        %1179 = vmatprep.subr.mxu0 0.0
        %1180 = vmatpush1.xpose.msra.mxu0 0.0
        %1181 = vmatprep.subr.mxu0 0.0
        %1182 = vmatpush1.xpose.msra.mxu0 0.0
        %1183 = vmatprep.subr.mxu0 0.0
        %1184 = vmatpush1.xpose.msra.mxu0 0.0
        %1185 = vmatprep.subr.mxu0 0.0
        %1186 = vmatpush1.xpose.msra.mxu0 0.0
        %1187 = vmatprep.subr.mxu0 0.0
        %1188 = vmatpush1.xpose.msra.mxu0 0.0
        %1189 = vmatprep.subr.mxu0 0.0
        %1190 = vmatpush1.xpose.msra.mxu0 0.0
        %1191 = vmatprep.subr.mxu0 0.0
        %1192 = vmatpush1.xpose.msra.mxu0 0.0
        %1193 = vmatprep.subr.mxu0 0.0
        %1194 = vmatpush1.xpose.msra.mxu0 0.0
        %1195 = vmatprep.subr.mxu0 0.0
        %1196 = vmatpush1.xpose.msra.mxu0 0.0
        %1197 = vmatprep.subr.mxu0 0.0
        %1198 = vmatpush1.xpose.msra.mxu0 0.0
        %1199 = vmatprep.mubr.f32.mxu0 %v340
        %1200 = vmatmul.mubr.f32.gmra.mrb[0].mxu0 %v338
        %v1201 = vpop.f32.mrb[0].mxu0
        %v1202 = vadd.f32 %v1132, %v1201
        %v1203 = vpop.f32.mrb[0].mxu0
        %1204 = vdwg.mxu0
        %v1205 = vadd.f32 %v208, %v1202
        %vm1206 = vcmask 58368
        %1207 = vst.msk [vmem:[%s189] sm:$0x3] %vm1206, %v1205
        %s1208 = sand.u32 %s89, 1
        %s1209 = scalar_lea.sflag [#allocation4], %s1208
        %s1210 = sand.u32 %s89, 1
        %s1211 = smul.addr %s1210, 2
        %s1212 = scalar_lea.vmem [#allocation7], %s1211
        // Predicated region
        $region41: #{tpu_custom_call.1} parent=27 // pred_check
          %p1213 = pneg %p99
        $region42: #{tpu_custom_call.1} parent=27 // pred_check_branch
          %1215 = sbr.rel (%p1213) target = $region44
        $region43: #{tpu_custom_call.1} parent=27 // pred_region
          %s1217 = ssub.s32 32, 32
          %1218 = vsyncadd %s1209, %s1217
          %s1219 = smul.addr %s24, 32
          %s1220 = scalar_lea.hbm %s2, %s1219
          %s1222 = sshll.u32 %s1212, 4
          %s1223 = int_to_ptr.vmem [resolvable:$true] %s1222
          %1225 = dma.vmem_to_hbm [thread:$0]  %s1223, 32, %s1220, %s1209
        $region44: #{tpu_custom_call.1} parent=27 // pred_fallthru
          _
      $region28: #{tpu_custom_call.1} parent=5 // pred_fallthru
        _
      %p1226 = scmp.le.s32.totalorder 2, %s15
      // Predicated region
      $region45: #{tpu_custom_call.1} parent=5 // pred_check
        %p1227 = pneg %p1226
      $region46: #{tpu_custom_call.1} parent=5 // pred_check_branch
        %1229 = sbr.rel (%p1227) target = $region48
      $region47: #{tpu_custom_call.1} parent=5 // pred_region
        %s1230 = ssub.s32 %s15, 2
        // Predicated region
        $region49: #{tpu_custom_call.1} parent=47 // pred_check
          %p1231 = pneg %p105
        $region50: #{tpu_custom_call.1} parent=47 // pred_check_branch
          %1233 = sbr.rel (%p1231) target = $region52
        $region51: #{tpu_custom_call.1} parent=47 // pred_region
          %s1234 = sand.u32 %s90, 1
          %s1235 = scalar_lea.sflag [#allocation4], %s1234
          %s1236 = sand.u32 %s90, 1
          %s1237 = smul.addr %s1236, 2
          %s1238 = scalar_lea.vmem [#allocation7], %s1237
          %1239 = dma.done %s1235, 32
        $region52: #{tpu_custom_call.1} parent=47 // pred_fallthru
          _
      $region48: #{tpu_custom_call.1} parent=5 // pred_fallthru
        _
    $region6: #{tpu_custom_call.1} parent=1 // loop_footer
      %s19 = sadd.s32 1, %s15
    $region7: #{tpu_custom_call.1} parent=1 // loop_footer_branch
      %14 = sbr.rel target = $region3
    $region8: #{tpu_custom_call.1} parent=1 // loop_exit
      _
    %1240 = vsyncpa [#allocation3], 1
    %s1241 = scalar_lea.sflag [#allocation3], 1
    %1242 = vsyncpa %s1241, 1
    %1243 = vsyncpa [#allocation6], 1
    %s1244 = scalar_lea.sflag [#allocation6], 1
    %1245 = vsyncpa %s1244, 1
    %1246 = vsyncpa [#allocation4], 1
    %s1247 = scalar_lea.sflag [#allocation4], 1
    %1248 = vsyncpa %s1247, 1

</llo_original>
